<compile_context>
chip_gen: v6e
topology: v6e:2x2x1
jax: 0.10.0
libtpu: 0.0.40
codegen_flags: <defaults>
</compile_context>

<pallas_src>
import jax
import jax.numpy as jnp
from jax.experimental import pallas as pl
from jax.experimental.pallas import tpu as pltpu

EPS = 1e-5  # nn.BatchNorm1d default eps
VMEM_LIMIT = 32 * 1024 * 1024  # safe on v5e (128 MiB phys), v6e (128 MiB), v7x (64 MiB)


def _pick_tile(n, candidates=(1024, 512, 256, 128)):
    """Largest lane tile that divides n; falls back to the full (small) extent."""
    for c in candidates:
        if n % c == 0:
            return c
    return n


# --------------------------- phase 1: BN statistics ---------------------------
def _stats_kernel(xp_ref, w_ref, b_ref, sum_ref, sq_ref):
    # Resident accumulators (same output block across the whole grid): init on first step.
    @pl.when(jnp.logical_and(pl.program_id(0) == 0, pl.program_id(1) == 0))
    def _():
        sum_ref[...] = jnp.zeros_like(sum_ref)
        sq_ref[...] = jnp.zeros_like(sq_ref)

    # Conv1d + bias + ReLU.  Rows [:C_out] = even conv positions, [C_out:] = odd positions.
    y = jnp.dot(w_ref[...], xp_ref[0], preferred_element_type=jnp.float32) + b_ref[...]
    y = jnp.maximum(y, 0.0)
    sum_ref[...] += jnp.sum(y, axis=1, keepdims=True)
    sq_ref[...] += jnp.sum(y * y, axis=1, keepdims=True)


# ------------------------ phase 2: normalize + maxpool ------------------------
def _apply_kernel(xp_ref, w_ref, b_ref, scale_ref, shift_ref, o_ref):
    y = jnp.dot(w_ref[...], xp_ref[0], preferred_element_type=jnp.float32) + b_ref[...]
    y = jnp.maximum(y, 0.0)
    c = scale_ref.shape[0]
    ye = y[:c, :]   # even conv positions (sublane slice at offset 0)
    yo = y[c:, :]   # odd conv positions  (sublane slice at offset C_out)
    scale = scale_ref[...]        # gamma * inv_std  -> sign(scale) == sign(gamma)
    shift = shift_ref[...]        # beta - mean * scale
    # Pool BEFORE normalizing: the per-channel affine is monotone up to sign(gamma),
    # so one select + one fused scale/shift replaces two full normalize passes.
    pooled = jnp.where(scale >= 0.0, jnp.maximum(ye, yo), jnp.minimum(ye, yo))
    o_ref[0] = pooled * scale + shift


def convlayer_forward(x, weight, bias, gamma, beta, *, stride=2, padding=1, pooling=2,
                      matmul_dtype=jnp.bfloat16):
    """x: (N, C_in, L) f32 -> (N, C_out, L_pool) f32 (PyTorch layout, no wrapper transpose)."""
    N, C_in, L = x.shape
    C_out, _, K = weight.shape
    assert stride == 2 and pooling == 2, "kernel specialised to the module defaults"
    L_out = (L + 2 * padding - K) // stride + 1
    # TODO(synk): odd L_out (MaxPool drops the trailing conv output while BN still counts it)
    # is not representable with this even/odd row split.
    assert L_out % 2 == 0, "kernel assumes an even conv output length"
    L_pool = L_out // pooling

    # ---- phase-slice construction (plain strided slices, no gather, no K-fold im2col copy) ----
    taps = K + stride * (pooling - 1)            # 5 input taps per pooled position
    step = stride * pooling                      # 4: input offset between pooled positions
    need = step * (L_pool - 1) + taps
    pad_r = padding + max(0, need - (L + 2 * padding))
    xpad = jnp.pad(x, ((0, 0), (0, 0), (padding, pad_r)))
    phases = [xpad[:, :, d:d + step * L_pool:step] for d in range(taps)]  # (N, C_in, L_pool) each
    XP = jnp.concatenate(phases, axis=1).astype(matmul_dtype)             # (N, taps*C_in, L_pool)

    # ---- block weight: top C_out rows -> even conv positions, bottom C_out rows -> odd ----
    w = weight.astype(jnp.float32)
    Wbig = jnp.zeros((2 * C_out, taps * C_in), jnp.float32)
    for k in range(K):
        Wbig = Wbig.at[:C_out, k * C_in:(k + 1) * C_in].set(w[:, :, k])
        Wbig = Wbig.at[C_out:, (k + stride) * C_in:(k + stride + 1) * C_in].set(w[:, :, k])
    Wbig = Wbig.astype(matmul_dtype)
    bbig = jnp.concatenate([bias, bias]).reshape(2 * C_out, 1).astype(jnp.float32)

    # ---- grid / specs (pipelined tiles over the pooled-length lane dim) ----
    TL = _pick_tile(L_pool)
    grid = (N, L_pool // TL)
    xp_spec = pl.BlockSpec((1, taps * C_in, TL), lambda n, t: (n, 0, t))
    w_spec = pl.BlockSpec((2 * C_out, taps * C_in), lambda n, t: (0, 0))
    b_spec = pl.BlockSpec((2 * C_out, 1), lambda n, t: (0, 0))

    # ---- phase 1: per-channel sum / sum-of-squares over all N*L_out conv outputs ----
    sums, sqs = pl.pallas_call(
        _stats_kernel,
        out_shape=(jax.ShapeDtypeStruct((2 * C_out, 1), jnp.float32),
                   jax.ShapeDtypeStruct((2 * C_out, 1), jnp.float32)),
        grid=grid,
        in_specs=[xp_spec, w_spec, b_spec],
        out_specs=(pl.BlockSpec((2 * C_out, 1), lambda n, t: (0, 0)),
                   pl.BlockSpec((2 * C_out, 1), lambda n, t: (0, 0))),
        compiler_params=pltpu.CompilerParams(
            dimension_semantics=("arbitrary", "arbitrary"),
            vmem_limit_bytes=VMEM_LIMIT),
    )(XP, Wbig, bbig)

    count = jnp.float32(N * L_out)
    total = sums[:C_out, 0] + sums[C_out:, 0]
    totsq = sqs[:C_out, 0] + sqs[C_out:, 0]
    mean = total / count
    # Clamp guards the (rare) slightly-negative E[x^2] - mean^2 from f32 cancellation.
    var = jnp.maximum(totsq / count - mean * mean, 0.0)
    inv = 1.0 / jnp.sqrt(var + EPS)
    scale = (gamma.astype(jnp.float32) * inv).reshape(C_out, 1)
    shift = beta.astype(jnp.float32).reshape(C_out, 1) - mean.reshape(C_out, 1) * scale

    # ---- phase 2: recompute conv tile, pool, fused normalize; lane-dense output ----
    flops = 2 * N * L_pool * (2 * C_out) * (taps * C_in) + 8 * N * L_pool * C_out
    bytes_accessed = int(XP.size) * XP.dtype.itemsize + N * C_out * L_pool * 4
    out = pl.pallas_call(
        _apply_kernel,
        out_shape=jax.ShapeDtypeStruct((N, C_out, L_pool), jnp.float32),
        grid=grid,
        in_specs=[xp_spec, w_spec, b_spec,
                  pl.BlockSpec((C_out, 1), lambda n, t: (0, 0)),
                  pl.BlockSpec((C_out, 1), lambda n, t: (0, 0))],
        out_specs=pl.BlockSpec((1, C_out, TL), lambda n, t: (n, 0, t)),
        compiler_params=pltpu.CompilerParams(
            dimension_semantics=("parallel", "parallel"),
            vmem_limit_bytes=VMEM_LIMIT),
        cost_estimate=pl.CostEstimate(flops=flops, transcendentals=0,
                                      bytes_accessed=bytes_accessed),
    )(XP, Wbig, bbig, scale, shift)
    return out


def convlayer_reference(x, weight, bias, gamma, beta, *, stride=2, padding=1):
    """Pure-JAX reference mirroring the PyTorch module (training-mode BN)."""
    y = jax.lax.conv_general_dilated(
        x, weight, window_strides=(stride,), padding=[(padding, padding)],
        dimension_numbers=("NCH", "OIH", "NCH"))
    y = y + bias[None, :, None]
    y = jnp.maximum(y, 0.0)
    mean = jnp.mean(y, axis=(0, 2), keepdims=True)
    var = jnp.mean((y - mean) ** 2, axis=(0, 2), keepdims=True)
    y = (y - mean) / jnp.sqrt(var + EPS) * gamma[None, :, None] + beta[None, :, None]
    N, C, Lo = y.shape
    Lp = Lo // 2
    y = y[:, :, : Lp * 2].reshape(N, C, Lp, 2)
    return jnp.max(y, axis=-1)


if __name__ == "__main__":
    # Small shapes consistent with the module: batch=2, in_channels=4, length=16, out_channels=8.
    N, C_in, C_out, L, K = 2, 4, 8, 16, 3

    key = jax.random.PRNGKey(0)
    kx, kw, kb, kg, kbe = jax.random.split(key, 5)
    x = jax.random.normal(kx, (N, C_in, L), dtype=jnp.float32)
    weight = jax.random.normal(kw, (C_out, C_in, K), dtype=jnp.float32) * 0.1
    bias = jax.random.normal(kb, (C_out,), dtype=jnp.float32) * 0.1
    gamma = jax.random.normal(kg, (C_out,), dtype=jnp.float32)        # mixed signs: exercises the
    beta = jax.random.normal(kbe, (C_out,), dtype=jnp.float32) * 0.1  # pool-before-BN select path

    # Quantize the conv operands to bf16-representable values so the bf16-fed kernel and the
    # f32 reference see identical inputs (isolates kernel logic from dtype rounding).
    x = x.astype(jnp.bfloat16).astype(jnp.float32)
    weight = weight.astype(jnp.bfloat16).astype(jnp.float32)

    out = jax.block_until_ready(convlayer_forward(x, weight, bias, gamma, beta))
    ref = convlayer_reference(x, weight, bias, gamma, beta)

    L_pool = ((L + 2 - K) // 2 + 1) // 2
    assert out.shape == ref.shape == (N, C_out, L_pool), (out.shape, ref.shape)
    err = float(jnp.max(jnp.abs(out - ref)))
    assert jnp.allclose(out, ref, rtol=1e-3, atol=1e-3), f"mismatch vs reference, max abs err {err}"

    print("KERNEL_OK")
</pallas_src>

<mosaic_0001>
module attributes {stable_mosaic.version = 11 : i64} {
  func.func @_stats_kernel(%arg0: i32, %arg1: i32, %arg2: memref<1x20x4xbf16, #tpu.memory_space<vmem>>, %arg3: memref<16x20xbf16, #tpu.memory_space<vmem>>, %arg4: memref<16x1xf32, #tpu.memory_space<vmem>>, %arg5: memref<16x1xf32, #tpu.memory_space<vmem>>, %arg6: memref<16x1xf32, #tpu.memory_space<vmem>>) attributes {dimension_semantics = [#tpu.dimension_semantics<arbitrary>, #tpu.dimension_semantics<arbitrary>], iteration_bounds = array<i64: 2, 1>, scalar_prefetch = 0 : i64, scratch_operands = 0 : i64, tpu.core_type = #tpu.core_type<tc>, window_params = [{transform_indices = @transform_0, window_bounds = array<i64: 1, 20, 4>}, {pipeline_mode = #tpu.pipeline_mode<synchronous>, transform_indices = @transform_1, window_bounds = array<i64: 16, 20>}, {pipeline_mode = #tpu.pipeline_mode<synchronous>, transform_indices = @transform_2, window_bounds = array<i64: 16, 1>}, {pipeline_mode = #tpu.pipeline_mode<synchronous>, transform_indices = @transform_3, window_bounds = array<i64: 16, 1>}, {pipeline_mode = #tpu.pipeline_mode<synchronous>, transform_indices = @transform_4, window_bounds = array<i64: 16, 1>}]} {
    %c0_i32 = arith.constant 0 : i32
    %0 = arith.cmpi eq, %arg0, %c0_i32 : i32
    %c0_i32_0 = arith.constant 0 : i32
    %1 = arith.cmpi eq, %arg1, %c0_i32_0 : i32
    %2 = arith.andi %0, %1 : i1
    %3 = arith.extui %2 : i1 to i32
    %c0_i32_1 = arith.constant 0 : i32
    %4 = arith.cmpi ne, %3, %c0_i32_1 : i32
    scf.if %4 {
      %cst_19 = arith.constant 0.000000e+00 : f32
      %25 = vector.broadcast %cst_19 : f32 to vector<16x1xf32>
      %c0_20 = arith.constant 0 : index
      %c0_21 = arith.constant 0 : index
      %26 = vector.load %arg5[%c0_20, %c0_21] : memref<16x1xf32, #tpu.memory_space<vmem>>, vector<16x1xf32>
      tpu.vector_store %arg5[%c0_20, %c0_21], %25 {strides = array<i32>} : memref<16x1xf32, #tpu.memory_space<vmem>>, vector<16x1xf32>,
      %cst_22 = arith.constant 0.000000e+00 : f32
      %27 = vector.broadcast %cst_22 : f32 to vector<16x1xf32>
      %c0_23 = arith.constant 0 : index
      %c0_24 = arith.constant 0 : index
      %28 = vector.load %arg6[%c0_23, %c0_24] : memref<16x1xf32, #tpu.memory_space<vmem>>, vector<16x1xf32>
      tpu.vector_store %arg6[%c0_23, %c0_24], %27 {strides = array<i32>} : memref<16x1xf32, #tpu.memory_space<vmem>>, vector<16x1xf32>,
    } else {
    }
    %c0 = arith.constant 0 : index
    %c0_2 = arith.constant 0 : index
    %5 = vector.load %arg3[%c0, %c0_2] : memref<16x20xbf16, #tpu.memory_space<vmem>>, vector<16x20xbf16>
    %c0_3 = arith.constant 0 : index
    %c0_4 = arith.constant 0 : index
    %c0_5 = arith.constant 0 : index
    %6 = vector.load %arg2[%c0_3, %c0_4, %c0_5] : memref<1x20x4xbf16, #tpu.memory_space<vmem>>, vector<1x20x4xbf16>
    %7 = vector.shape_cast %6 : vector<1x20x4xbf16> to vector<20x4xbf16>
    %cst = arith.constant dense<0.000000e+00> : vector<16x4xf32>
    %8 = tpu.matmul %5, %7, %cst {dimension_numbers = #tpu.dot_dimension_numbers<[1], [0], [0], [1], [0, 0, 1, 1], [], []>} : vector<16x20xbf16>, vector<20x4xbf16>, vector<16x4xf32> -> vector<16x4xf32>
    %c0_6 = arith.constant 0 : index
    %c0_7 = arith.constant 0 : index
    %9 = vector.load %arg4[%c0_6, %c0_7] : memref<16x1xf32, #tpu.memory_space<vmem>>, vector<16x1xf32>
    %10 = vector.broadcast %9 : vector<16x1xf32> to vector<16x4xf32>
    %11 = arith.addf %8, %10 : vector<16x4xf32>
    %cst_8 = arith.constant 0.000000e+00 : f32
    %12 = vector.broadcast %cst_8 : f32 to vector<16x4xf32>
    %13 = arith.maximumf %11, %12 : vector<16x4xf32>
    %c0_9 = arith.constant 0 : index
    %c0_10 = arith.constant 0 : index
    %14 = vector.load %arg5[%c0_9, %c0_10] : memref<16x1xf32, #tpu.memory_space<vmem>>, vector<16x1xf32>
    %cst_11 = arith.constant dense<0.000000e+00> : vector<16xf32>
    %15 = vector.multi_reduction <add>, %13, %cst_11 [1] : vector<16x4xf32> to vector<16xf32>
    %16 = vector.shape_cast %15 : vector<16xf32> to vector<16x1xf32>
    %17 = arith.addf %14, %16 : vector<16x1xf32>
    %c0_12 = arith.constant 0 : index
    %c0_13 = arith.constant 0 : index
    %18 = vector.load %arg5[%c0_12, %c0_13] : memref<16x1xf32, #tpu.memory_space<vmem>>, vector<16x1xf32>
    tpu.vector_store %arg5[%c0_12, %c0_13], %17 {strides = array<i32>} : memref<16x1xf32, #tpu.memory_space<vmem>>, vector<16x1xf32>,
    %c0_14 = arith.constant 0 : index
    %c0_15 = arith.constant 0 : index
    %19 = vector.load %arg6[%c0_14, %c0_15] : memref<16x1xf32, #tpu.memory_space<vmem>>, vector<16x1xf32>
    %20 = arith.mulf %13, %13 : vector<16x4xf32>
    %cst_16 = arith.constant dense<0.000000e+00> : vector<16xf32>
    %21 = vector.multi_reduction <add>, %20, %cst_16 [1] : vector<16x4xf32> to vector<16xf32>
    %22 = vector.shape_cast %21 : vector<16xf32> to vector<16x1xf32>
    %23 = arith.addf %19, %22 : vector<16x1xf32>
    %c0_17 = arith.constant 0 : index
    %c0_18 = arith.constant 0 : index
    %24 = vector.load %arg6[%c0_17, %c0_18] : memref<16x1xf32, #tpu.memory_space<vmem>>, vector<16x1xf32>
    tpu.vector_store %arg6[%c0_17, %c0_18], %23 {strides = array<i32>} : memref<16x1xf32, #tpu.memory_space<vmem>>, vector<16x1xf32>,
    return
  }
  func.func @transform_0(%arg0: i32, %arg1: i32) -> (i32, i32, i32) {
    %c0_i32 = arith.constant 0 : i32
    %c0_i32_0 = arith.constant 0 : i32
    return %arg0, %c0_i32, %arg1 : i32, i32, i32
  }
  func.func @transform_1(%arg0: i32, %arg1: i32) -> (i32, i32) {
    %c0_i32 = arith.constant 0 : i32
    %c0_i32_0 = arith.constant 0 : i32
    %c0_i32_1 = arith.constant 0 : i32
    return %c0_i32, %c0_i32_0 : i32, i32
  }
  func.func @transform_2(%arg0: i32, %arg1: i32) -> (i32, i32) {
    %c0_i32 = arith.constant 0 : i32
    %c0_i32_0 = arith.constant 0 : i32
    %c0_i32_1 = arith.constant 0 : i32
    return %c0_i32, %c0_i32_0 : i32, i32
  }
  func.func @transform_3(%arg0: i32, %arg1: i32) -> (i32, i32) {
    %c0_i32 = arith.constant 0 : i32
    %c0_i32_0 = arith.constant 0 : i32
    %c0_i32_1 = arith.constant 0 : i32
    return %c0_i32, %c0_i32_0 : i32, i32
  }
  func.func @transform_4(%arg0: i32, %arg1: i32) -> (i32, i32) {
    %c0_i32 = arith.constant 0 : i32
    %c0_i32_0 = arith.constant 0 : i32
    %c0_i32_1 = arith.constant 0 : i32
    return %c0_i32, %c0_i32_0 : i32, i32
  }
}

</mosaic_0001>

<llo_original>
// kernel: tpu_custom_call.1
$region0: #{tpu_custom_call.1}
  #allocation0 [shape = 'u32[]', space=smem, size = 0x4, offset = 0x4, fixed_abs, tag = 'smem constant byte address 0x4 - core index']
  #allocation1 [shape = 'u32[144,128]{1,0:T(1,128)}', space=vmem, size = 0x12000, scoped, tag = 'internal scratch']
  %s0 = inlined_call_operand.vmem [shape: bf16[2,20,4], index: 0, kind: input, shape index: {}]
  %s1 = inlined_call_operand.vmem [shape: bf16[16,20], index: 1, kind: input, shape index: {}]
  %s2 = inlined_call_operand.vmem [shape: f32[16,1], index: 2, kind: input, shape index: {}]
  %s3 = inlined_call_operand.vmem [shape: f32[16,1], index: 3, kind: output, shape index: {0}]
  %s4 = inlined_call_operand.vmem [shape: f32[16,1], index: 4, kind: output, shape index: {1}]
  %5 = xla_tuple %s3, %s4
  %s6 = sld [smem:[#allocation0]]
  $region57: #{tpu_custom_call.1} parent=0
    _
  %s8 = ssub.s32 1, %s6
  %s9 = scalar_select 0, %s8, %s6
  loop: start=0, step=1, limit=4
  $region2: #{tpu_custom_call.1} parent=0 // loop_pre_header
    _
  $region3: #{tpu_custom_call.1} parent=0 // loop_header
    %s11 = sphi 0, %s15
    %p12 = scmp.ge.s32.totalorder %s11, 4
    %s18 = sphi 0, %s30
    %s19 = sphi 0, %s26
    %s20 = sphi 0, %s18
    %s21 = sphi 0, %s19
    %s22 = sphi 0, %s20
    %s23 = sphi 0, %s21
    %s35 = sphi 0, %s37
    %s38 = sphi 0, %s35
    %s39 = sphi 0, %s38
    %s55 = sphi 0, %s39
    %s59 = sphi 0, %s59
    %s61 = sphi 0, %s59
    %s62 = sphi 0, %s61
    %s76 = sphi 0, %s62
    %s80 = sphi 0, %s80
    %s82 = sphi 0, %s80
    %s83 = sphi 0, %s82
    %s97 = sphi 0, %s83
    %s101 = sphi 0, %s101
    %s103 = sphi 0, %s101
    %s104 = sphi 0, %s103
    %s118 = sphi 0, %s104
    %s122 = sphi 0, %s122
    %s124 = sphi 0, %s122
    %s125 = sphi 0, %s124
    %s139 = sphi 0, %s125
  $region4: #{tpu_custom_call.1} parent=0 // loop_header_branch
    %14 = sbr.rel (%p12) target = $region8
  $region5: #{tpu_custom_call.1} parent=0 // loop_body
    %s16 = ssub.s32 %s11, 1
    %s17 = ssub.s32 %s11, 2
    %s24 = sadd.s32 1, %s19
    %p25 = scmp.ge.s32.totalorder %s24, 1
    %s26 = scalar_select %p25, 0, %s24
    %s27 = sadd.s32 1, %s18
    %s28 = scalar_select %p25, %s27, %s18
    %p29 = scmp.ge.s32.totalorder %s28, 2
    %s30 = scalar_select %p29, 0, %s28
    %s31 = ssub.s32 %s18, %s30
    %s32 = ssub.s32 %s19, %s26
    %s33 = sor.u32 %s31, %s32
    %p34 = scmp.eq.s32.totalorder %s33, 0
    %s36 = sadd.s32 %s35, 1
    %s37 = scalar_select %p34, %s35, %s36
    %p40 = pneg %p34
    %p41 = scmp.eq.s32.totalorder %s11, 1
    %p42 = por %p40, %p41
    %p43 = scmp.ne.s32.totalorder %s35, %s38
    %p44 = scmp.eq.s32.totalorder %s11, 0
    %p45 = por %p43, %p44
    %p46 = scmp.ne.s32.totalorder %s35, %s38
    %p47 = scmp.eq.s32.totalorder %s16, 1
    %p48 = por %p46, %p47
    %p49 = scmp.ne.s32.totalorder %s38, %s39
    %p50 = scmp.eq.s32.totalorder %s16, 0
    %p51 = por %p49, %p50
    %p52 = scmp.ne.s32.totalorder %s38, %s39
    %p53 = scmp.eq.s32.totalorder %s17, 1
    %p54 = por %p52, %p53
    %p56 = scmp.ne.s32.totalorder %s39, %s55
    %p57 = scmp.eq.s32.totalorder %s17, 0
    %p58 = por %p56, %p57
    %s60 = sadd.s32 %s59, 1
    %p63 = scmp.eq.s32.totalorder %s11, 1
    %p64 = scmp.ne.s32.totalorder %s59, %s61
    %p65 = scmp.eq.s32.totalorder %s11, 0
    %p66 = por %p64, %p65
    %p67 = scmp.ne.s32.totalorder %s59, %s61
    %p68 = scmp.eq.s32.totalorder %s16, 1
    %p69 = por %p67, %p68
    %p70 = scmp.ne.s32.totalorder %s61, %s62
    %p71 = scmp.eq.s32.totalorder %s16, 0
    %p72 = por %p70, %p71
    %p73 = scmp.ne.s32.totalorder %s61, %s62
    %p74 = scmp.eq.s32.totalorder %s17, 1
    %p75 = por %p73, %p74
    %p77 = scmp.ne.s32.totalorder %s62, %s76
    %p78 = scmp.eq.s32.totalorder %s17, 0
    %p79 = por %p77, %p78
    %s81 = sadd.s32 %s80, 1
    %p84 = scmp.eq.s32.totalorder %s11, 1
    %p85 = scmp.ne.s32.totalorder %s80, %s82
    %p86 = scmp.eq.s32.totalorder %s11, 0
    %p87 = por %p85, %p86
    %p88 = scmp.ne.s32.totalorder %s80, %s82
    %p89 = scmp.eq.s32.totalorder %s16, 1
    %p90 = por %p88, %p89
    %p91 = scmp.ne.s32.totalorder %s82, %s83
    %p92 = scmp.eq.s32.totalorder %s16, 0
    %p93 = por %p91, %p92
    %p94 = scmp.ne.s32.totalorder %s82, %s83
    %p95 = scmp.eq.s32.totalorder %s17, 1
    %p96 = por %p94, %p95
    %p98 = scmp.ne.s32.totalorder %s83, %s97
    %p99 = scmp.eq.s32.totalorder %s17, 0
    %p100 = por %p98, %p99
    %s102 = sadd.s32 %s101, 1
    %p105 = scmp.eq.s32.totalorder %s11, 1
    %p106 = scmp.ne.s32.totalorder %s101, %s103
    %p107 = scmp.eq.s32.totalorder %s11, 0
    %p108 = por %p106, %p107
    %p109 = scmp.ne.s32.totalorder %s101, %s103
    %p110 = scmp.eq.s32.totalorder %s16, 1
    %p111 = por %p109, %p110
    %p112 = scmp.ne.s32.totalorder %s103, %s104
    %p113 = scmp.eq.s32.totalorder %s16, 0
    %p114 = por %p112, %p113
    %p115 = scmp.ne.s32.totalorder %s103, %s104
    %p116 = scmp.eq.s32.totalorder %s17, 1
    %p117 = por %p115, %p116
    %p119 = scmp.ne.s32.totalorder %s104, %s118
    %p120 = scmp.eq.s32.totalorder %s17, 0
    %p121 = por %p119, %p120
    %s123 = sadd.s32 %s122, 1
    %p126 = scmp.eq.s32.totalorder %s11, 1
    %p127 = scmp.ne.s32.totalorder %s122, %s124
    %p128 = scmp.eq.s32.totalorder %s11, 0
    %p129 = por %p127, %p128
    %p130 = scmp.ne.s32.totalorder %s122, %s124
    %p131 = scmp.eq.s32.totalorder %s16, 1
    %p132 = por %p130, %p131
    %p133 = scmp.ne.s32.totalorder %s124, %s125
    %p134 = scmp.eq.s32.totalorder %s16, 0
    %p135 = por %p133, %p134
    %p136 = scmp.ne.s32.totalorder %s124, %s125
    %p137 = scmp.eq.s32.totalorder %s17, 1
    %p138 = por %p136, %p137
    %p140 = scmp.ne.s32.totalorder %s125, %s139
    %p141 = scmp.eq.s32.totalorder %s17, 0
    %p142 = por %p140, %p141
    %p143 = scmp.le.s32.totalorder 1, %s11
    %p144 = scmp.lt.s32.totalorder %s11, 3
    %p145 = pnand %p143, %p144
    %p146 = pneg %p145
    // Predicated region
    $region9: #{tpu_custom_call.1} parent=5 // pred_check
      _
    $region10: #{tpu_custom_call.1} parent=5 // pred_check_branch
      %148 = sbr.rel (%p145) target = $region12
    $region11: #{tpu_custom_call.1} parent=5 // pred_region
      %s149 = ssub.s32 %s11, 1
      // Predicated region
      $region13: #{tpu_custom_call.1} parent=11 // pred_check
        %p150 = pneg %p72
      $region14: #{tpu_custom_call.1} parent=11 // pred_check_branch
        %152 = sbr.rel (%p150) target = $region16
      $region15: #{tpu_custom_call.1} parent=11 // pred_region
        _
      $region16: #{tpu_custom_call.1} parent=11 // pred_fallthru
        _
      // Predicated region
      $region17: #{tpu_custom_call.1} parent=11 // pred_check
        %p153 = pneg %p93
      $region18: #{tpu_custom_call.1} parent=11 // pred_check_branch
        %155 = sbr.rel (%p153) target = $region20
      $region19: #{tpu_custom_call.1} parent=11 // pred_region
        _
      $region20: #{tpu_custom_call.1} parent=11 // pred_fallthru
        _
    $region12: #{tpu_custom_call.1} parent=5 // pred_fallthru
      _
    %p156 = scmp.lt.s32.totalorder %s11, 2
    // Predicated region
    $region21: #{tpu_custom_call.1} parent=5 // pred_check
      %p157 = pneg %p156
    $region22: #{tpu_custom_call.1} parent=5 // pred_check_branch
      %159 = sbr.rel (%p157) target = $region24
    $region23: #{tpu_custom_call.1} parent=5 // pred_region
      // Predicated region
      $region25: #{tpu_custom_call.1} parent=23 // pred_check
        %p160 = pneg %p45
      $region26: #{tpu_custom_call.1} parent=23 // pred_check_branch
        %162 = sbr.rel (%p160) target = $region28
      $region27: #{tpu_custom_call.1} parent=23 // pred_region
        %p163 = scmp.lt.s32.totalorder %s18, 1
        %s164 = scalar_select %p163, %s18, 1
        %p165 = scmp.lt.s32.totalorder %s19, 0
        %s166 = scalar_select %p165, %s19, 0
        %s167 = smul.addr %s164, 3
        %s168 = sadd.s32 %s166, %s167
        %s169 = smul.addr %s168, 4
        %s170 = scalar_lea.vmem %s0, %s169
      $region28: #{tpu_custom_call.1} parent=23 // pred_fallthru
        _
    $region24: #{tpu_custom_call.1} parent=5 // pred_fallthru
      _
    %p171 = scmp.le.s32.totalorder 1, %s11
    %p172 = scmp.lt.s32.totalorder %s11, 3
    %p173 = pnand %p171, %p172
    %p174 = pneg %p173
    // Predicated region
    $region29: #{tpu_custom_call.1} parent=5 // pred_check
      _
    $region30: #{tpu_custom_call.1} parent=5 // pred_check_branch
      %176 = sbr.rel (%p173) target = $region32
    $region31: #{tpu_custom_call.1} parent=5 // pred_region
      %s177 = ssub.s32 %s11, 1
      %p178 = scmp.lt.s32.totalorder %s20, 1
      %s179 = scalar_select %p178, %s20, 1
      %p180 = scmp.lt.s32.totalorder %s21, 0
      %s181 = scalar_select %p180, %s21, 0
      %s182 = smul.addr %s179, 3
      %s183 = sadd.s32 %s181, %s182
      %s184 = smul.addr %s183, 4
      %s185 = scalar_lea.vmem %s0, %s184
      %p186 = pneg %p51
      %p187 = pneg %p48
      %p188 = pneg %p72
      %p189 = pneg %p69
      %p190 = pneg %p93
      %p191 = pneg %p90
      %p192 = pneg %p114
      %p193 = pneg %p111
      %p194 = pneg %p135
      %p195 = pneg %p132
      %p196 = scmp.lt.s32.totalorder %s20, 1
      %s197 = scalar_select %p196, %s20, 1
      %p198 = scmp.lt.s32.totalorder %s21, 0
      %s199 = scalar_select %p198, %s21, 0
      %s200 = smul.addr %s197, 3
      %s201 = sadd.s32 %s199, %s200
      %s202 = smul.addr %s201, 4
      %s203 = scalar_lea.vmem %s0, %s202
      %p205 = scmp.eq.s32.totalorder %s20, 0
      %p206 = scmp.eq.s32.totalorder %s21, 0
      %p207 = pnand %p205, %p206
      %p208 = pneg %p207
      // Predicated region
      $region33: #{tpu_custom_call.1} parent=31 // pred_check
        _
      $region34: #{tpu_custom_call.1} parent=31 // pred_check_branch
        %210 = sbr.rel (%p207) target = $region36
      $region35: #{tpu_custom_call.1} parent=31 // pred_region
        %vm211 = vcmask 7168
        %212 = vst.msk [vmem:[%s3] sm:$0xff] %vm211, 0.0
        %213 = vst.msk [vmem:[%s3 + $0x8] sm:$0xff] %vm211, 0.0
        %214 = vst.msk [vmem:[%s4] sm:$0xff] %vm211, 0.0
        %215 = vst.msk [vmem:[%s4 + $0x8] sm:$0xff] %vm211, 0.0
      $region36: #{tpu_custom_call.1} parent=31 // pred_fallthru
        _
      %v216 = vld [vmem:[%s1] sm:$0xf]
      %v217 = vld [vmem:[%s1 + $0x4] sm:$0xf]
      %v218 = vld [vmem:[%s203] sm:$0xf]
      %v219 = vld [vmem:[%s203 + $0x4] sm:$0xf]
      %v220 = vld [vmem:[%s203 + $0x8] sm:$0x3]
      %v221 = vld [vmem:[%s2] sm:$0xff]
      %v222 = vld [vmem:[%s2 + $0x8] sm:$0xff]
      %224 = vset.pattern.permute.xlu0 0
      %225 = vperm.xlu0 %224, %v221
      %v226 = vpop.permute.xlu0 %225
      %229 = vset.pattern.permute.xlu0 0
      %230 = vperm.xlu0 %229, %v222
      %v231 = vpop.permute.xlu0 %230
      %v235 = vunpack.c.l.b16 %v216
      %v236 = vunpack.c.l.b16 %v217
      %v237 = vpack.c.b16 %v236, %v235
      %v241 = vunpack.c.l.b16 %v218
      %v242 = vunpack.c.l.b16 %v219
      %v243 = vunpack.c.l.b16 %v220
      %v244 = vpack.c.b16 %v242, %v241
      %v245 = vpack.c.b16 %v243, %v243
      %vm247 = vcmask 162816
      %v249 = vsel %vm247, %v237, 0
      %vm251 = vcmask 1041408
      %v253 = vsel %vm251, %v245, 0
      %255 = vmatprep.subr.bf16.mxu0 0
      %256 = vmatpush1.bf16.msra.mxu0 0
      %257 = vmatprep.subr.bf16.mxu0 0
      %258 = vmatpush1.bf16.msra.mxu0 0
      %259 = vmatprep.subr.bf16.mxu0 0
      %260 = vmatpush1.bf16.msra.mxu0 0
      %261 = vmatprep.subr.bf16.mxu0 0
      %262 = vmatpush1.bf16.msra.mxu0 0
      %263 = vmatprep.subr.bf16.mxu0 0
      %264 = vmatpush1.bf16.msra.mxu0 0
      %265 = vmatprep.subr.bf16.mxu0 0
      %266 = vmatpush1.bf16.msra.mxu0 0
      %267 = vmatprep.subr.bf16.mxu0 0
      %268 = vmatpush1.bf16.msra.mxu0 %v253
      %269 = vmatprep.subr.bf16.mxu0 0
      %270 = vmatpush1.bf16.msra.mxu0 %v244
      %271 = vmatprep.subr.bf16.mxu0 0
      %272 = vmatpush2.bf16.msra.mxu0 0
      %273 = vmatprep.subr.bf16.mxu0 0
      %274 = vmatpush2.bf16.msra.mxu0 0
      %275 = vmatprep.subr.bf16.mxu0 0
      %276 = vmatpush2.bf16.msra.mxu0 0
      %277 = vmatprep.subr.bf16.mxu0 0
      %278 = vmatpush2.bf16.msra.mxu0 0
      %279 = vmatprep.subr.bf16.mxu0 0
      %280 = vmatpush2.bf16.msra.mxu0 0
      %281 = vmatprep.subr.bf16.mxu0 0
      %282 = vmatpush2.bf16.msra.mxu0 0
      %283 = vmatprep.subr.bf16.mxu0 0
      %284 = vmatpush2.bf16.msra.mxu0 0
      %285 = vmatprep.subr.bf16.mxu0 0
      %286 = vmatpush2.bf16.msra.mxu0 0
      %287 = vmatprep.mubr.bf16.mxu0 0
      %288 = vmatmul.mubr.bf16.gmra.mxu0 %v249
      %v289 = vpop.f32.mrf.mxu0
      %v290 = vadd.f32 %v226, %v289
      %v291 = vpop.f32.mrf.mxu0
      %v292 = vpop.f32.mrf.mxu0
      %v293 = vadd.f32 %v231, %v292
      %v294 = vpop.f32.mrf.mxu0
      %295 = vdwg.mxu0
      %v296 = vmax.f32 %v290, 0.0
      %v297 = vmax.f32 %v293, 0.0
      %v298 = vld [vmem:[%s3] sm:$0xff]
      %v299 = vld [vmem:[%s3 + $0x8] sm:$0xff]
      %vm300 = vcmask 31744
      %v301 = vsel %vm300, %v296, 0.0
      %302 = vadd.xlane.f32.xlu0 %v301
      %v303 = vpop.xlane.xlu0 %302
      %v304 = vsel %vm300, %v297, 0.0
      %305 = vadd.xlane.f32.xlu0 %v304
      %v306 = vpop.xlane.xlu0 %305
      %v307 = vadd.f32 %v298, %v303
      %v308 = vadd.f32 %v299, %v306
      %vm309 = vcmask 7168
      %310 = vst.msk [vmem:[%s3] sm:$0xff] %vm309, %v307
      %311 = vst.msk [vmem:[%s3 + $0x8] sm:$0xff] %vm309, %v308
      %v312 = vld [vmem:[%s4] sm:$0xff]
      %v313 = vld [vmem:[%s4 + $0x8] sm:$0xff]
      %v314 = vmul.f32 %v296, %v296
      %v315 = vmul.f32 %v297, %v297
      %v316 = vsel %vm300, %v314, 0.0
      %317 = vadd.xlane.f32.xlu0 %v316
      %v318 = vpop.xlane.xlu0 %317
      %v319 = vsel %vm300, %v315, 0.0
      %320 = vadd.xlane.f32.xlu0 %v319
      %v321 = vpop.xlane.xlu0 %320
      %v322 = vadd.f32 %v312, %v318
      %v323 = vadd.f32 %v313, %v321
      %324 = vst.msk [vmem:[%s4] sm:$0xff] %vm309, %v322
      %325 = vst.msk [vmem:[%s4 + $0x8] sm:$0xff] %vm309, %v323
      // Predicated region
      $region37: #{tpu_custom_call.1} parent=31 // pred_check
        %p326 = pneg %p111
      $region38: #{tpu_custom_call.1} parent=31 // pred_check_branch
        %328 = sbr.rel (%p326) target = $region40
      $region39: #{tpu_custom_call.1} parent=31 // pred_region
        _
      $region40: #{tpu_custom_call.1} parent=31 // pred_fallthru
        _
      // Predicated region
      $region41: #{tpu_custom_call.1} parent=31 // pred_check
        %p329 = pneg %p132
      $region42: #{tpu_custom_call.1} parent=31 // pred_check_branch
        %331 = sbr.rel (%p329) target = $region44
      $region43: #{tpu_custom_call.1} parent=31 // pred_region
        _
      $region44: #{tpu_custom_call.1} parent=31 // pred_fallthru
        _
      // Predicated region
      $region45: #{tpu_custom_call.1} parent=31 // pred_check
        %p332 = pneg %p111
      $region46: #{tpu_custom_call.1} parent=31 // pred_check_branch
        %334 = sbr.rel (%p332) target = $region48
      $region47: #{tpu_custom_call.1} parent=31 // pred_region
        _
      $region48: #{tpu_custom_call.1} parent=31 // pred_fallthru
        _
      // Predicated region
      $region49: #{tpu_custom_call.1} parent=31 // pred_check
        %p335 = pneg %p132
      $region50: #{tpu_custom_call.1} parent=31 // pred_check_branch
        %337 = sbr.rel (%p335) target = $region52
      $region51: #{tpu_custom_call.1} parent=31 // pred_region
        _
      $region52: #{tpu_custom_call.1} parent=31 // pred_fallthru
        _
    $region32: #{tpu_custom_call.1} parent=5 // pred_fallthru
      _
    %p338 = scmp.le.s32.totalorder 2, %s11
    // Predicated region
    $region53: #{tpu_custom_call.1} parent=5 // pred_check
      %p339 = pneg %p338
    $region54: #{tpu_custom_call.1} parent=5 // pred_check_branch
      %341 = sbr.rel (%p339) target = $region56
    $region55: #{tpu_custom_call.1} parent=5 // pred_region
      %s342 = ssub.s32 %s11, 2
    $region56: #{tpu_custom_call.1} parent=5 // pred_fallthru
      _
  $region6: #{tpu_custom_call.1} parent=0 // loop_footer
    %s15 = sadd.s32 1, %s11
  $region7: #{tpu_custom_call.1} parent=0 // loop_footer_branch
    %10 = sbr.rel target = $region3
  $region8: #{tpu_custom_call.1} parent=0 // loop_exit
    _

</llo_original>
